<compile_context>
chip_gen: v7x
topology: tpu7x:2x2x1
jax: 0.10.0
libtpu: 0.0.40
codegen_flags: <defaults>
</compile_context>

<pallas_src>
import functools

import jax
import jax.numpy as jnp
from jax.experimental import pallas as pl
from jax.experimental.pallas import tpu as pltpu

_LANE = 128


def _round_up(x, m):
    return (x + m - 1) // m * m


def _fused_kernel(x_ref, w_branch_ref, w_shared_ref, w_head_ref, b_ref, out_ref,
                  *, h3, h, seg0, seg1, head_pad):
    """One grid step = one batch tile through the whole network.

    x_ref        : (TM, D_total)           f32   concatenated [wifi | magnetic | ibeacon]
    w_branch_ref : (D_total, 3H)           bf16  block-diagonal branch weight
    w_shared_ref : (3H, H)                 bf16  shared_fc weight (rows in concat order)
    w_head_ref   : (H, head_pad)           bf16  [site | floor | zero-pad] head weight
    b_ref        : (1, seg0+seg1+head_pad) f32   packed biases (128-lane-aligned segments)
    out_ref      : (TM, head_pad)          f32   [site | floor | zero-pad]
    """
    x = x_ref[...]

    # --- 3 branch Linears + ReLU fused into ONE block-diagonal matmul ----------
    feat = jnp.dot(x.astype(w_branch_ref.dtype), w_branch_ref[...],
                   preferred_element_type=jnp.float32)
    feat = jnp.maximum(feat + b_ref[:, 0:h3], 0.0)

    # --- shared_fc(cat(features)) + ReLU: one matmul over the fused features ---
    shared = jnp.dot(feat.astype(w_shared_ref.dtype), w_shared_ref[...],
                     preferred_element_type=jnp.float32)
    shared = jnp.maximum(shared + b_ref[:, seg0:seg0 + h], 0.0)

    # --- site + floor heads fused into one lane-dense (128-wide) matmul --------
    out = jnp.dot(shared.astype(w_head_ref.dtype), w_head_ref[...],
                  preferred_element_type=jnp.float32)
    out_ref[...] = out + b_ref[:, seg0 + seg1:seg0 + seg1 + head_pad]


def pack_params(params, *, hidden_dim, num_sites, num_floors,
                compute_dtype=jnp.bfloat16):
    """Pack the PyTorch-layout params ([in,out] weights, (1,out) biases) for the kernel."""
    # TODO(synk): disabled branches (input_dim == 0 in the PyTorch ctor) are not modeled;
    #             all three branches are assumed active.
    (w_wifi, b_wifi, w_mag, b_mag, w_ib, b_ib,
     w_sh_w, w_sh_m, w_sh_i, b_sh, w_site, b_site, w_floor, b_floor) = params

    dw, dm, di = w_wifi.shape[0], w_mag.shape[0], w_ib.shape[0]
    d_total = dw + dm + di
    h = hidden_dim
    h3 = 3 * h
    n_head = num_sites + num_floors
    head_pad = _round_up(n_head, _LANE)

    # cat([wifi,mag,ib]) @ blockdiag(Ww,Wm,Wi) == [wifi@Ww | mag@Wm | ib@Wi]
    w_branch = jnp.zeros((d_total, h3), jnp.float32)
    w_branch = w_branch.at[0:dw, 0:h].set(w_wifi)
    w_branch = w_branch.at[dw:dw + dm, h:2 * h].set(w_mag)
    w_branch = w_branch.at[dw + dm:, 2 * h:].set(w_ib)

    # shared_fc weight over total_hidden_dim, rows in torch.cat order
    w_shared = jnp.concatenate([w_sh_w, w_sh_m, w_sh_i], axis=0)

    # fused, zero-padded output head for a lane-dense store
    w_head = jnp.zeros((h, head_pad), jnp.float32)
    w_head = w_head.at[:, 0:num_sites].set(w_site)
    w_head = w_head.at[:, num_sites:n_head].set(w_floor)

    # one packed bias slab; each segment starts on a 128-lane boundary
    seg0 = _round_up(h3, _LANE)
    seg1 = _round_up(h, _LANE)
    b_all = jnp.zeros((1, seg0 + seg1 + head_pad), jnp.float32)
    b_all = b_all.at[:, 0:h3].set(jnp.concatenate([b_wifi, b_mag, b_ib], axis=1))
    b_all = b_all.at[:, seg0:seg0 + h].set(b_sh)
    b_all = b_all.at[:, seg0 + seg1:seg0 + seg1 + n_head].set(
        jnp.concatenate([b_site, b_floor], axis=1))

    return dict(
        w_branch=w_branch.astype(compute_dtype),
        w_shared=w_shared.astype(compute_dtype),
        w_head=w_head.astype(compute_dtype),
        b_all=b_all,
        hidden_dim=h, num_sites=num_sites, num_floors=num_floors,
        d_total=d_total, seg0=seg0, seg1=seg1, head_pad=head_pad,
    )


def multimodal_forward(wifi_x, magnetic_x, ibeacon_x, packed, *, block_m=256):
    """Fused forward pass. Returns (site_pred, floor_pred) in float32."""
    w_branch = packed["w_branch"]
    w_shared = packed["w_shared"]
    w_head = packed["w_head"]
    b_all = packed["b_all"]
    h = packed["hidden_dim"]
    h3 = 3 * h
    num_sites = packed["num_sites"]
    num_floors = packed["num_floors"]
    seg0, seg1, head_pad = packed["seg0"], packed["seg1"], packed["head_pad"]

    # Single concatenated input => one input DMA, one branch matmul in-kernel.
    x = jnp.concatenate([wifi_x, magnetic_x, ibeacon_x], axis=1).astype(jnp.float32)
    batch, d_total = x.shape

    # Batch tile: multiple of 8 sublanes, capped at block_m (keep well under VMEM
    # even on v7x's smaller 64 MiB VMEM; each pipelined operand is double-buffered).
    tm = min(block_m, _round_up(batch, 8))
    padded_batch = _round_up(batch, tm)
    if padded_batch != batch:
        x = jnp.pad(x, ((0, padded_batch - batch), (0, 0)))
    grid = (padded_batch // tm,)

    kernel = functools.partial(_fused_kernel, h3=h3, h=h,
                               seg0=seg0, seg1=seg1, head_pad=head_pad)

    out = pl.pallas_call(
        kernel,
        out_shape=jax.ShapeDtypeStruct((padded_batch, head_pad), jnp.float32),
        grid=grid,
        in_specs=[
            # batch-tiled activation
            pl.BlockSpec((tm, d_total), lambda i: (i, 0)),
            # weights / biases: constant index_map -> fetched once, stay VMEM-resident
            pl.BlockSpec(w_branch.shape, lambda i: (0, 0)),
            pl.BlockSpec(w_shared.shape, lambda i: (0, 0)),
            pl.BlockSpec(w_head.shape, lambda i: (0, 0)),
            pl.BlockSpec(b_all.shape, lambda i: (0, 0)),
        ],
        out_specs=pl.BlockSpec((tm, head_pad), lambda i: (i, 0)),
        compiler_params=pltpu.CompilerParams(
            dimension_semantics=("parallel",)),
    )(x, w_branch, w_shared, w_head, b_all)

    site = out[:batch, :num_sites]
    floor = out[:batch, num_sites:num_sites + num_floors]
    return site, floor


def reference_forward(wifi_x, magnetic_x, ibeacon_x, params):
    """Pure-JAX f32 reference matching the PyTorch forward semantics."""
    (w_wifi, b_wifi, w_mag, b_mag, w_ib, b_ib,
     w_sh_w, w_sh_m, w_sh_i, b_sh, w_site, b_site, w_floor, b_floor) = params
    wifi_feat = jax.nn.relu(wifi_x @ w_wifi + b_wifi)
    mag_feat = jax.nn.relu(magnetic_x @ w_mag + b_mag)
    ib_feat = jax.nn.relu(ibeacon_x @ w_ib + b_ib)
    combined = jnp.concatenate([wifi_feat, mag_feat, ib_feat], axis=1)
    w_shared = jnp.concatenate([w_sh_w, w_sh_m, w_sh_i], axis=0)
    shared = jax.nn.relu(combined @ w_shared + b_sh)
    return shared @ w_site + b_site, shared @ w_floor + b_floor


if __name__ == "__main__":
    # Small, module-consistent shapes.
    batch = 8
    wifi_input_dim = 32
    magnetic_input_dim = 4
    ibeacon_input_dim = 16
    hidden_dim = 32
    num_sites = 24
    num_floors = 8

    key = jax.random.PRNGKey(0)
    keys = jax.random.split(key, 20)

    def init(k, shape, scale=0.1):
        return (scale * jax.random.normal(k, shape)).astype(jnp.float32)

    # Inputs
    wifi_x = init(keys[0], (batch, wifi_input_dim), 1.0)
    magnetic_x = init(keys[1], (batch, magnetic_input_dim), 1.0)
    ibeacon_x = init(keys[2], (batch, ibeacon_input_dim), 1.0)

    # Parameters (deterministic synthetic init). Weights are [in, out]; biases (1, out).
    w_wifi = init(keys[3], (wifi_input_dim, hidden_dim))
    b_wifi = init(keys[4], (1, hidden_dim))
    w_mag = init(keys[5], (magnetic_input_dim, hidden_dim))
    b_mag = init(keys[6], (1, hidden_dim))
    w_ib = init(keys[7], (ibeacon_input_dim, hidden_dim))
    b_ib = init(keys[8], (1, hidden_dim))
    w_sh_w = init(keys[9], (hidden_dim, hidden_dim))
    w_sh_m = init(keys[10], (hidden_dim, hidden_dim))
    w_sh_i = init(keys[11], (hidden_dim, hidden_dim))
    b_sh = init(keys[12], (1, hidden_dim))
    w_site = init(keys[13], (hidden_dim, num_sites))
    b_site = init(keys[14], (1, num_sites))
    w_floor = init(keys[15], (hidden_dim, num_floors))
    b_floor = init(keys[16], (1, num_floors))

    raw_params = (w_wifi, b_wifi, w_mag, b_mag, w_ib, b_ib,
                  w_sh_w, w_sh_m, w_sh_i, b_sh,
                  w_site, b_site, w_floor, b_floor)

    packed = pack_params(raw_params, hidden_dim=hidden_dim,
                         num_sites=num_sites, num_floors=num_floors,
                         compute_dtype=jnp.bfloat16)

    site_pred, floor_pred = multimodal_forward(wifi_x, magnetic_x, ibeacon_x, packed)
    jax.block_until_ready((site_pred, floor_pred))

    # Validate against the pure-JAX f32 reference of the PyTorch forward.
    site_ref, floor_ref = reference_forward(wifi_x, magnetic_x, ibeacon_x, raw_params)
    assert site_pred.shape == (batch, num_sites)
    assert floor_pred.shape == (batch, num_floors)
    # Tolerances loosened because matmul operands run in bf16 (f32 accumulate).
    assert jnp.allclose(site_pred, site_ref, atol=5e-2, rtol=5e-2)
    assert jnp.allclose(floor_pred, floor_ref, atol=5e-2, rtol=5e-2)

    print("KERNEL_OK")
</pallas_src>

<mosaic_0001>
module attributes {stable_mosaic.version = 11 : i64} {
  func.func @_fused_kernel(%arg0: i32, %arg1: memref<8x52xf32, #tpu.memory_space<vmem>>, %arg2: memref<52x96xbf16, #tpu.memory_space<vmem>>, %arg3: memref<96x32xbf16, #tpu.memory_space<vmem>>, %arg4: memref<32x128xbf16, #tpu.memory_space<vmem>>, %arg5: memref<1x384xf32, #tpu.memory_space<vmem>>, %arg6: memref<8x128xf32, #tpu.memory_space<vmem>>) attributes {dimension_semantics = [#tpu.dimension_semantics<parallel>], iteration_bounds = array<i64: 1>, scalar_prefetch = 0 : i64, scratch_operands = 0 : i64, tpu.core_type = #tpu.core_type<tc>, window_params = [{transform_indices = @transform_0, window_bounds = array<i64: 8, 52>}, {pipeline_mode = #tpu.pipeline_mode<synchronous>, transform_indices = @transform_1, window_bounds = array<i64: 52, 96>}, {pipeline_mode = #tpu.pipeline_mode<synchronous>, transform_indices = @transform_2, window_bounds = array<i64: 96, 32>}, {pipeline_mode = #tpu.pipeline_mode<synchronous>, transform_indices = @transform_3, window_bounds = array<i64: 32, 128>}, {pipeline_mode = #tpu.pipeline_mode<synchronous>, transform_indices = @transform_4, window_bounds = array<i64: 1, 384>}, {transform_indices = @transform_5, window_bounds = array<i64: 8, 128>}]} {
    %c0 = arith.constant 0 : index
    %c0_0 = arith.constant 0 : index
    %0 = vector.load %arg1[%c0, %c0_0] : memref<8x52xf32, #tpu.memory_space<vmem>>, vector<8x52xf32>
    %1 = arith.truncf %0 : vector<8x52xf32> to vector<8x52xbf16>
    %c0_1 = arith.constant 0 : index
    %c0_2 = arith.constant 0 : index
    %2 = vector.load %arg2[%c0_1, %c0_2] : memref<52x96xbf16, #tpu.memory_space<vmem>>, vector<52x96xbf16>
    %cst = arith.constant dense<0.000000e+00> : vector<8x96xf32>
    %3 = tpu.matmul %1, %2, %cst {dimension_numbers = #tpu.dot_dimension_numbers<[1], [0], [0], [1], [0, 0, 1, 1], [], []>} : vector<8x52xbf16>, vector<52x96xbf16>, vector<8x96xf32> -> vector<8x96xf32>
    %c0_3 = arith.constant 0 : index
    %c0_4 = arith.constant 0 : index
    %4 = vector.load %arg5[%c0_3, %c0_4] : memref<1x384xf32, #tpu.memory_space<vmem>>, vector<1x96xf32>
    %5 = vector.broadcast %4 : vector<1x96xf32> to vector<8x96xf32>
    %6 = arith.addf %3, %5 : vector<8x96xf32>
    %cst_5 = arith.constant 0.000000e+00 : f32
    %7 = vector.broadcast %cst_5 : f32 to vector<8x96xf32>
    %8 = arith.maximumf %6, %7 : vector<8x96xf32>
    %9 = arith.truncf %8 : vector<8x96xf32> to vector<8x96xbf16>
    %c0_6 = arith.constant 0 : index
    %c0_7 = arith.constant 0 : index
    %10 = vector.load %arg3[%c0_6, %c0_7] : memref<96x32xbf16, #tpu.memory_space<vmem>>, vector<96x32xbf16>
    %cst_8 = arith.constant dense<0.000000e+00> : vector<8x32xf32>
    %11 = tpu.matmul %9, %10, %cst_8 {dimension_numbers = #tpu.dot_dimension_numbers<[1], [0], [0], [1], [0, 0, 1, 1], [], []>} : vector<8x96xbf16>, vector<96x32xbf16>, vector<8x32xf32> -> vector<8x32xf32>
    %c0_9 = arith.constant 0 : index
    %c128 = arith.constant 128 : index
    %12 = vector.load %arg5[%c0_9, %c128] : memref<1x384xf32, #tpu.memory_space<vmem>>, vector<1x32xf32>
    %13 = vector.broadcast %12 : vector<1x32xf32> to vector<8x32xf32>
    %14 = arith.addf %11, %13 : vector<8x32xf32>
    %cst_10 = arith.constant 0.000000e+00 : f32
    %15 = vector.broadcast %cst_10 : f32 to vector<8x32xf32>
    %16 = arith.maximumf %14, %15 : vector<8x32xf32>
    %17 = arith.truncf %16 : vector<8x32xf32> to vector<8x32xbf16>
    %c0_11 = arith.constant 0 : index
    %c0_12 = arith.constant 0 : index
    %18 = vector.load %arg4[%c0_11, %c0_12] : memref<32x128xbf16, #tpu.memory_space<vmem>>, vector<32x128xbf16>
    %cst_13 = arith.constant dense<0.000000e+00> : vector<8x128xf32>
    %19 = tpu.matmul %17, %18, %cst_13 {dimension_numbers = #tpu.dot_dimension_numbers<[1], [0], [0], [1], [0, 0, 1, 1], [], []>} : vector<8x32xbf16>, vector<32x128xbf16>, vector<8x128xf32> -> vector<8x128xf32>
    %c0_14 = arith.constant 0 : index
    %c256 = arith.constant 256 : index
    %20 = vector.load %arg5[%c0_14, %c256] : memref<1x384xf32, #tpu.memory_space<vmem>>, vector<1x128xf32>
    %21 = vector.broadcast %20 : vector<1x128xf32> to vector<8x128xf32>
    %22 = arith.addf %19, %21 : vector<8x128xf32>
    %c0_15 = arith.constant 0 : index
    %c0_16 = arith.constant 0 : index
    %23 = vector.load %arg6[%c0_15, %c0_16] : memref<8x128xf32, #tpu.memory_space<vmem>>, vector<8x128xf32>
    tpu.vector_store %arg6[%c0_15, %c0_16], %22 {strides = array<i32>} : memref<8x128xf32, #tpu.memory_space<vmem>>, vector<8x128xf32>,
    return
  }
  func.func @transform_0(%arg0: i32) -> (i32, i32) {
    %c0_i32 = arith.constant 0 : i32
    %c0_i32_0 = arith.constant 0 : i32
    return %arg0, %c0_i32 : i32, i32
  }
  func.func @transform_1(%arg0: i32) -> (i32, i32) {
    %c0_i32 = arith.constant 0 : i32
    %c0_i32_0 = arith.constant 0 : i32
    %c0_i32_1 = arith.constant 0 : i32
    return %c0_i32, %c0_i32_0 : i32, i32
  }
  func.func @transform_2(%arg0: i32) -> (i32, i32) {
    %c0_i32 = arith.constant 0 : i32
    %c0_i32_0 = arith.constant 0 : i32
    %c0_i32_1 = arith.constant 0 : i32
    return %c0_i32, %c0_i32_0 : i32, i32
  }
  func.func @transform_3(%arg0: i32) -> (i32, i32) {
    %c0_i32 = arith.constant 0 : i32
    %c0_i32_0 = arith.constant 0 : i32
    %c0_i32_1 = arith.constant 0 : i32
    return %c0_i32, %c0_i32_0 : i32, i32
  }
  func.func @transform_4(%arg0: i32) -> (i32, i32) {
    %c0_i32 = arith.constant 0 : i32
    %c0_i32_0 = arith.constant 0 : i32
    %c0_i32_1 = arith.constant 0 : i32
    return %c0_i32, %c0_i32_0 : i32, i32
  }
  func.func @transform_5(%arg0: i32) -> (i32, i32) {
    %c0_i32 = arith.constant 0 : i32
    %c0_i32_0 = arith.constant 0 : i32
    return %arg0, %c0_i32 : i32, i32
  }
}

</mosaic_0001>

<llo_original>
// kernel: tpu_custom_call.1
$region0: #{tpu_custom_call.1}
  #allocation0 [shape = 'u32[]', space=smem, size = 0x4, offset = 0x4, fixed_abs, tag = 'smem constant byte address 0x4 - core index']
  #allocation1 [shape = 'u32[144,128]{1,0:T(1,128)}', space=vmem, size = 0x12000, scoped, tag = 'internal scratch']
  %s0 = inlined_call_operand.vmem [shape: f32[8,52], index: 0, kind: input, shape index: {}]
  %s1 = inlined_call_operand.vmem [shape: bf16[52,96], index: 1, kind: input, shape index: {}]
  %s2 = inlined_call_operand.vmem [shape: bf16[96,32], index: 2, kind: input, shape index: {}]
  %s3 = inlined_call_operand.vmem [shape: bf16[32,128], index: 3, kind: input, shape index: {}]
  %s4 = inlined_call_operand.vmem [shape: f32[1,384], index: 4, kind: input, shape index: {}]
  %s5 = inlined_call_operand.hbm [shape: f32[8,128], index: 5, kind: output, shape index: {}]
  %s6 = sld [smem:[#allocation0]]
  $region30: #{tpu_custom_call.1} parent=0
    _
  %s8 = ssub.s32 1, %s6
  %s9 = scalar_select 0, %s8, %s6
  $region1: #{tpu_custom_call.1} parent=0
    #allocation2 [shape = 'u8[4096]{0}', space=vmem, size = 0x1000, scoped, tag = 'output window, operand 0, single buffered']
    #allocation3 [shape = 's32[1]{0}', space=sflag, size = 0x4, scoped, tag = 'scoped memory for tpu_custom_call.1']
    %10 = vsyncpa [#allocation3], 0
    // Predicated region
    $region2: #{tpu_custom_call.1} parent=1 // pred_check
      _
    $region3: #{tpu_custom_call.1} parent=1 // pred_check_branch
      %12 = sbr.rel (0) target = $region5
    $region4: #{tpu_custom_call.1} parent=1 // pred_region
      _
    $region5: #{tpu_custom_call.1} parent=1 // pred_fallthru
      _
    // Predicated region
    $region6: #{tpu_custom_call.1} parent=1 // pred_check
      _
    $region7: #{tpu_custom_call.1} parent=1 // pred_check_branch
      %14 = sbr.rel (0) target = $region9
    $region8: #{tpu_custom_call.1} parent=1 // pred_region
      _
    $region9: #{tpu_custom_call.1} parent=1 // pred_fallthru
      _
    // Predicated region
    $region10: #{tpu_custom_call.1} parent=1 // pred_check
      _
    $region11: #{tpu_custom_call.1} parent=1 // pred_check_branch
      %16 = sbr.rel (0) target = $region13
    $region12: #{tpu_custom_call.1} parent=1 // pred_region
      _
    $region13: #{tpu_custom_call.1} parent=1 // pred_fallthru
      _
    // Predicated region
    $region14: #{tpu_custom_call.1} parent=1 // pred_check
      _
    $region15: #{tpu_custom_call.1} parent=1 // pred_check_branch
      %18 = sbr.rel (0) target = $region17
    $region16: #{tpu_custom_call.1} parent=1 // pred_region
      _
    $region17: #{tpu_custom_call.1} parent=1 // pred_fallthru
      _
    // Predicated region
    $region18: #{tpu_custom_call.1} parent=1 // pred_check
      _
    $region19: #{tpu_custom_call.1} parent=1 // pred_check_branch
      %20 = sbr.rel (0) target = $region21
    $region20: #{tpu_custom_call.1} parent=1 // pred_region
      _
    $region21: #{tpu_custom_call.1} parent=1 // pred_fallthru
      _
    %v22 = vld [vmem:[%s0] sm:$0xff]
    %v23 = vpack.c.bf16 %v22, %v22
    %v24 = vld [vmem:[%s1] sm:$0xf]
    %v25 = vld [vmem:[%s1 + $0x4] sm:$0xf]
    %v26 = vld [vmem:[%s1 + $0x8] sm:$0xf]
    %v27 = vld [vmem:[%s1 + $0xc] sm:$0xf]
    %v28 = vld [vmem:[%s1 + $0x10] sm:$0xf]
    %v29 = vld [vmem:[%s1 + $0x14] sm:$0xf]
    %v30 = vld [vmem:[%s1 + $0x18] sm:$0x3]
    %v31 = vld [vmem:[%s4] sm:$0x1]
    %v33 = vlaneseq
    %v34 = vshrl.u32 %v33, 7
    %v35 = vsub.s32 0, %v34
    %v36 = vrot.slane %v31, %v35
    %v45 = vunpack.c.l.b16 %v24
    %v46 = vunpack.c.l.b16 %v25
    %v47 = vunpack.c.l.b16 %v26
    %v48 = vunpack.c.l.b16 %v27
    %v49 = vunpack.c.l.b16 %v28
    %v50 = vunpack.c.l.b16 %v29
    %v51 = vunpack.c.l.b16 %v30
    %v52 = vpack.c.b16 %v46, %v45
    %v53 = vpack.c.b16 %v48, %v47
    %v54 = vpack.c.b16 %v50, %v49
    %v55 = vpack.c.b16 %v51, %v51
    %vm59 = vcmask 424960
    %v61 = vsel %vm59, %v23, 0
    %vm63 = vcmask 1041408
    %v65 = vsel %vm63, %v55, 0
    %67 = vmatprep.subr.bf16.mxu0 0
    %68 = vmatpush1.bf16.msra.mxu0 %v52
    %69 = vmatprep.subr.bf16.mxu0 0
    %70 = vmatpush1.bf16.msra.mxu0 %v53
    %71 = vmatprep.subr.bf16.mxu0 0
    %72 = vmatpush1.bf16.msra.mxu0 %v54
    %73 = vmatprep.subr.bf16.mxu0 0
    %74 = vmatpush1.bf16.msra.mxu0 %v65
    %75 = vmatprep.subr.bf16.mxu0 0
    %76 = vmatpush1.bf16.msra.mxu0 0
    %77 = vmatprep.subr.bf16.mxu0 0
    %78 = vmatpush1.bf16.msra.mxu0 0
    %79 = vmatprep.subr.bf16.mxu0 0
    %80 = vmatpush1.bf16.msra.mxu0 0
    %81 = vmatprep.subr.bf16.mxu0 0
    %82 = vmatpush1.bf16.msra.mxu0 0
    %83 = vmatprep.subr.bf16.mxu0 0
    %84 = vmatpush1.bf16.msra.mxu0 0
    %85 = vmatprep.subr.bf16.mxu0 0
    %86 = vmatpush1.bf16.msra.mxu0 0
    %87 = vmatprep.subr.bf16.mxu0 0
    %88 = vmatpush1.bf16.msra.mxu0 0
    %89 = vmatprep.subr.bf16.mxu0 0
    %90 = vmatpush1.bf16.msra.mxu0 0
    %91 = vmatprep.subr.bf16.mxu0 0
    %92 = vmatpush1.bf16.msra.mxu0 0
    %93 = vmatprep.subr.bf16.mxu0 0
    %94 = vmatpush1.bf16.msra.mxu0 0
    %95 = vmatprep.subr.bf16.mxu0 0
    %96 = vmatpush1.bf16.msra.mxu0 0
    %97 = vmatprep.subr.bf16.mxu0 0
    %98 = vmatpush1.bf16.msra.mxu0 0
    %99 = vmatprep.mubr.bf16.mxu0 0
    %100 = vmatmul.mubr.bf16.gmra.mrb[0].mxu0 %v61
    %v101 = vpop.f32.mrb[0].mxu0
    %v102 = vadd.f32 %v36, %v101
    %v103 = vpop.f32.mrb[0].mxu0
    %v104 = vpop.f32.mrb[0].mxu0
    %v105 = vpop.f32.mrb[0].mxu0
    %106 = vdwg.mxu0
    %v107 = vmax.f32 %v102, 0.0
    %v108 = vpack.c.bf16 %v107, %v107
    %v109 = vld [vmem:[%s2] sm:$0xf]
    %v110 = vld [vmem:[%s2 + $0x4] sm:$0xf]
    %v111 = vld [vmem:[%s2 + $0x8] sm:$0xf]
    %v112 = vld [vmem:[%s2 + $0xc] sm:$0xf]
    %v113 = vld [vmem:[%s2 + $0x10] sm:$0xf]
    %v114 = vld [vmem:[%s2 + $0x14] sm:$0xf]
    %v115 = vld [vmem:[%s2 + $0x18] sm:$0xf]
    %v116 = vld [vmem:[%s2 + $0x1c] sm:$0xf]
    %v117 = vld [vmem:[%s2 + $0x20] sm:$0xf]
    %v118 = vld [vmem:[%s2 + $0x24] sm:$0xf]
    %v119 = vld [vmem:[%s2 + $0x28] sm:$0xf]
    %v120 = vld [vmem:[%s2 + $0x2c] sm:$0xf]
    %v121 = vld [vmem:[%s4 + $0x1] sm:$0x1]
    %v123 = vlaneseq
    %v124 = vshrl.u32 %v123, 7
    %v125 = vsub.s32 0, %v124
    %v126 = vrot.slane %v121, %v125
    %v140 = vunpack.c.l.b16 %v109
    %v141 = vunpack.c.l.b16 %v110
    %v142 = vunpack.c.l.b16 %v111
    %v143 = vunpack.c.l.b16 %v112
    %v144 = vunpack.c.l.b16 %v113
    %v145 = vunpack.c.l.b16 %v114
    %v146 = vunpack.c.l.b16 %v115
    %v147 = vunpack.c.l.b16 %v116
    %v148 = vunpack.c.l.b16 %v117
    %v149 = vunpack.c.l.b16 %v118
    %v150 = vunpack.c.l.b16 %v119
    %v151 = vunpack.c.l.b16 %v120
    %v152 = vpack.c.b16 %v141, %v140
    %v153 = vpack.c.b16 %v143, %v142
    %v154 = vpack.c.b16 %v145, %v144
    %v155 = vpack.c.b16 %v147, %v146
    %v156 = vpack.c.b16 %v149, %v148
    %v157 = vpack.c.b16 %v151, %v150
    %vm164 = vcmask 785408
    %v166 = vsel %vm164, %v108, 0
    %168 = vmatprep.subr.bf16.mxu0 0
    %169 = vmatpush1.bf16.msra.mxu0 %v152
    %170 = vmatprep.subr.bf16.mxu0 0
    %171 = vmatpush1.bf16.msra.mxu0 %v153
    %172 = vmatprep.subr.bf16.mxu0 0
    %173 = vmatpush1.bf16.msra.mxu0 %v154
    %174 = vmatprep.subr.bf16.mxu0 0
    %175 = vmatpush1.bf16.msra.mxu0 %v155
    %176 = vmatprep.subr.bf16.mxu0 0
    %177 = vmatpush1.bf16.msra.mxu0 %v156
    %178 = vmatprep.subr.bf16.mxu0 0
    %179 = vmatpush1.bf16.msra.mxu0 %v157
    %180 = vmatprep.subr.bf16.mxu0 0
    %181 = vmatpush1.bf16.msra.mxu0 0
    %182 = vmatprep.subr.bf16.mxu0 0
    %183 = vmatpush1.bf16.msra.mxu0 0
    %184 = vmatprep.subr.bf16.mxu0 0
    %185 = vmatpush1.bf16.msra.mxu0 0
    %186 = vmatprep.subr.bf16.mxu0 0
    %187 = vmatpush1.bf16.msra.mxu0 0
    %188 = vmatprep.subr.bf16.mxu0 0
    %189 = vmatpush1.bf16.msra.mxu0 0
    %190 = vmatprep.subr.bf16.mxu0 0
    %191 = vmatpush1.bf16.msra.mxu0 0
    %192 = vmatprep.subr.bf16.mxu0 0
    %193 = vmatpush1.bf16.msra.mxu0 0
    %194 = vmatprep.subr.bf16.mxu0 0
    %195 = vmatpush1.bf16.msra.mxu0 0
    %196 = vmatprep.subr.bf16.mxu0 0
    %197 = vmatpush1.bf16.msra.mxu0 0
    %198 = vmatprep.subr.bf16.mxu0 0
    %199 = vmatpush1.bf16.msra.mxu0 0
    %200 = vmatprep.mubr.bf16.mxu0 0
    %201 = vmatmul.mubr.bf16.gmra.mrb[0].mxu0 %v166
    %v202 = vpop.f32.mrb[0].mxu0
    %v203 = vadd.f32 %v126, %v202
    %v204 = vpop.f32.mrb[0].mxu0
    %v205 = vpop.f32.mrb[0].mxu0
    %v206 = vpop.f32.mrb[0].mxu0
    %207 = vdwg.mxu0
    %v208 = vmax.f32 %v203, 0.0
    %v209 = vpack.c.bf16 %v208, %v208
    %v210 = vld [vmem:[%s3] sm:$0xf]
    %v211 = vld [vmem:[%s3 + $0x4] sm:$0xf]
    %v212 = vld [vmem:[%s3 + $0x8] sm:$0xf]
    %v213 = vld [vmem:[%s3 + $0xc] sm:$0xf]
    %v214 = vld [vmem:[%s4 + $0x2] sm:$0x1]
    %v216 = vlaneseq
    %v217 = vshrl.u32 %v216, 7
    %v218 = vsub.s32 0, %v217
    %v219 = vrot.slane %v214, %v218
    %v225 = vunpack.c.l.b16 %v210
    %v226 = vunpack.c.l.b16 %v211
    %v227 = vunpack.c.l.b16 %v212
    %v228 = vunpack.c.l.b16 %v213
    %v229 = vpack.c.b16 %v226, %v225
    %v230 = vpack.c.b16 %v228, %v227
    %vm233 = vcmask 261120
    %v235 = vsel %vm233, %v209, 0
    %237 = vmatprep.subr.bf16.mxu0 0
    %238 = vmatpush1.bf16.msra.mxu0 %v229
    %239 = vmatprep.subr.bf16.mxu0 0
    %240 = vmatpush1.bf16.msra.mxu0 %v230
    %241 = vmatprep.subr.bf16.mxu0 0
    %242 = vmatpush1.bf16.msra.mxu0 0
    %243 = vmatprep.subr.bf16.mxu0 0
    %244 = vmatpush1.bf16.msra.mxu0 0
    %245 = vmatprep.subr.bf16.mxu0 0
    %246 = vmatpush1.bf16.msra.mxu0 0
    %247 = vmatprep.subr.bf16.mxu0 0
    %248 = vmatpush1.bf16.msra.mxu0 0
    %249 = vmatprep.subr.bf16.mxu0 0
    %250 = vmatpush1.bf16.msra.mxu0 0
    %251 = vmatprep.subr.bf16.mxu0 0
    %252 = vmatpush1.bf16.msra.mxu0 0
    %253 = vmatprep.subr.bf16.mxu0 0
    %254 = vmatpush1.bf16.msra.mxu0 0
    %255 = vmatprep.subr.bf16.mxu0 0
    %256 = vmatpush1.bf16.msra.mxu0 0
    %257 = vmatprep.subr.bf16.mxu0 0
    %258 = vmatpush1.bf16.msra.mxu0 0
    %259 = vmatprep.subr.bf16.mxu0 0
    %260 = vmatpush1.bf16.msra.mxu0 0
    %261 = vmatprep.subr.bf16.mxu0 0
    %262 = vmatpush1.bf16.msra.mxu0 0
    %263 = vmatprep.subr.bf16.mxu0 0
    %264 = vmatpush1.bf16.msra.mxu0 0
    %265 = vmatprep.subr.bf16.mxu0 0
    %266 = vmatpush1.bf16.msra.mxu0 0
    %267 = vmatprep.subr.bf16.mxu0 0
    %268 = vmatpush1.bf16.msra.mxu0 0
    %269 = vmatprep.mubr.bf16.mxu0 0
    %270 = vmatmul.mubr.bf16.gmra.mrb[0].mxu0 %v235
    %v271 = vpop.f32.mrb[0].mxu0
    %v272 = vadd.f32 %v219, %v271
    %v273 = vpop.f32.mrb[0].mxu0
    %v274 = vpop.f32.mrb[0].mxu0
    %v275 = vpop.f32.mrb[0].mxu0
    %276 = vdwg.mxu0
    %277 = vst [vmem:[#allocation2] sm:$0xff] %v272
    // Predicated region
    $region22: #{tpu_custom_call.1} parent=1 // pred_check
      _
    $region23: #{tpu_custom_call.1} parent=1 // pred_check_branch
      %279 = sbr.rel (0) target = $region25
    $region24: #{tpu_custom_call.1} parent=1 // pred_region
      %s281 = ssub.s32 128, 128
      %282 = vsyncadd [#allocation3], %s281
      %s284 = sshll.u32 [#allocation2], 4
      %s285 = int_to_ptr.vmem [resolvable:$true] %s284
      %287 = dma.vmem_to_hbm [thread:$0]  %s285, 128, %s5, [#allocation3]
    $region25: #{tpu_custom_call.1} parent=1 // pred_fallthru
      _
    // Predicated region
    $region26: #{tpu_custom_call.1} parent=1 // pred_check
      _
    $region27: #{tpu_custom_call.1} parent=1 // pred_check_branch
      %289 = sbr.rel (0) target = $region29
    $region28: #{tpu_custom_call.1} parent=1 // pred_region
      %290 = dma.done [#allocation3], 128
    $region29: #{tpu_custom_call.1} parent=1 // pred_fallthru
      _
    %291 = vsyncpa [#allocation3], 1

</llo_original>
